<compile_context>
chip_gen: v5e
topology: v5e:2x2
jax: 0.10.0
libtpu: 0.0.40
codegen_flags: <defaults>
</compile_context>

<pallas_src>
import math
import functools

import jax
import jax.numpy as jnp
from jax.experimental import pallas as pl
from jax.experimental.pallas import tpu as pltpu


def _cdiv(a, b):
    return (a + b - 1) // b


def _round_up(x, m):
    return _cdiv(x, m) * m


def _eq_linear_kernel_f32(x_ref, w_ref, b_ref, o_ref, *, c):
    """float32 output: accumulate straight into the K-resident output block."""
    k = pl.program_id(2)

    @pl.when(k == 0)
    def _():
        o_ref[...] = jnp.zeros_like(o_ref)

    # x tile: (tm, tk); w tile: (tk, tn)  -> canonical MXU contraction, no transpose.
    o_ref[...] += jnp.dot(x_ref[...], w_ref[...],
                          preferred_element_type=jnp.float32)

    @pl.when(k == pl.num_programs(2) - 1)
    def _():
        # Equalization scale + bias fused into the epilogue (f32 throughout).
        o_ref[...] = o_ref[...] * c + b_ref[...]


def _eq_linear_kernel_acc(x_ref, w_ref, b_ref, o_ref, acc_ref, *, c):
    """Low-precision output: f32 VMEM accumulator + cast epilogue."""
    k = pl.program_id(2)

    @pl.when(k == 0)
    def _():
        acc_ref[...] = jnp.zeros_like(acc_ref)

    acc_ref[...] += jnp.dot(x_ref[...], w_ref[...],
                            preferred_element_type=jnp.float32)

    @pl.when(k == pl.num_programs(2) - 1)
    def _():
        o_ref[...] = (acc_ref[...] * c + b_ref[...]).astype(o_ref.dtype)


def _pick_tile(dim, cap, align):
    """Return (tile, padded_dim).

    If the dimension fits under the cap we use a full-extent block (legal even
    when not (8,128)-aligned) and avoid padding entirely. Otherwise pick a
    balanced, `align`-multiple tile and pad minimally.
    """
    if dim <= cap:
        return dim, dim
    n_tiles = _cdiv(dim, cap)
    tile = _round_up(_cdiv(dim, n_tiles), align)
    return tile, tile * n_tiles


# Tile caps: large enough to amortize per-step pipeline overhead and minimize
# HBM re-reads, small enough that double-buffered f32 footprint (~19 MiB) fits
# comfortably inside v7x's 64 MiB physical VMEM.
_TM_CAP = 512     # multiple of 8 (16 for packed dtypes)
_TN_CAP = 512     # multiple of 256 (matches 2x256^2 MXU on v6e/v7x)
_TK_CAP = 2048    # multiple of 256
_VMEM_LIMIT_BYTES = 48 * 1024 * 1024  # > v5e 16 MiB default, < v7x 64 MiB physical


def equalized_linear(x, weight, bias, *, matmul_dtype=None):
    """x: (..., in_features); weight: (out_features, in_features); bias: (out_features,).

    matmul_dtype: optional dtype (e.g. jnp.bfloat16) for the MXU operands; the
    accumulation, equalization scale and bias add stay in float32.
    """
    orig_shape = x.shape
    in_features = orig_shape[-1]
    out_features, in_features_w = weight.shape
    assert in_features == in_features_w
    c = 1.0 / math.sqrt(in_features)  # scale uses the *original* in_features

    out_dtype = x.dtype
    x2d = x.reshape(-1, in_features)
    M, K = x2d.shape
    N = out_features

    # Optional bf16 (or other) MXU operands; everything else stays f32.
    if matmul_dtype is not None:
        x2d = x2d.astype(matmul_dtype)
        weight = weight.astype(matmul_dtype)

    # Pre-transpose the weight ONCE to (K, N): canonical MXU layout, no per-tile
    # XLU transpose of the weight block inside the kernel.
    w_t = weight.T
    b2d = bias.astype(jnp.float32).reshape(1, N)

    op_itemsize = jnp.dtype(x2d.dtype).itemsize
    m_align = 8 if op_itemsize >= 4 else 16  # packed dtypes tile sublanes in pairs

    tm, M_pad = _pick_tile(M, _TM_CAP, m_align)
    tk, K_pad = _pick_tile(K, _TK_CAP, 128)
    tn, N_pad = _pick_tile(N, _TN_CAP, 128)

    # v7x has 2 TensorCores: make sure there are >= 2 parallel (i, j) tiles when
    # it is legal to split one of them.
    if (M_pad // tm) * (N_pad // tn) == 1:
        if tm % (2 * m_align) == 0:
            tm //= 2
        elif tn % 256 == 0:
            tn //= 2

    # Pad only when actually needed (full-extent blocks need no padding).
    if (M_pad, K_pad) != (M, K):
        x2d = jnp.pad(x2d, ((0, M_pad - M), (0, K_pad - K)))
    if (K_pad, N_pad) != (K, N):
        w_t = jnp.pad(w_t, ((0, K_pad - K), (0, N_pad - N)))
    if N_pad != N:
        b2d = jnp.pad(b2d, ((0, 0), (0, N_pad - N)))

    grid = (M_pad // tm, N_pad // tn, K_pad // tk)

    use_direct_acc = (out_dtype == jnp.float32)
    if use_direct_acc:
        kernel = functools.partial(_eq_linear_kernel_f32, c=c)
        scratch_shapes = []
    else:
        kernel = functools.partial(_eq_linear_kernel_acc, c=c)
        scratch_shapes = [pltpu.VMEM((tm, tn), jnp.float32)]

    out_itemsize = jnp.dtype(out_dtype).itemsize
    cost = pl.CostEstimate(
        flops=int(2 * M * N * K),
        transcendentals=0,
        bytes_accessed=int(M_pad * K_pad * op_itemsize
                           + K_pad * N_pad * op_itemsize
                           + N_pad * 4
                           + M_pad * N_pad * out_itemsize),
    )

    # NOTE(v7x small-M regime): pipeline_mode=pl.Buffered(3) on the weight
    # BlockSpec can further hide DMA issue latency; left at the default depth
    # here for portability.
    out_p = pl.pallas_call(
        kernel,
        out_shape=jax.ShapeDtypeStruct((M_pad, N_pad), out_dtype),
        grid_spec=pltpu.PrefetchScalarGridSpec(
            num_scalar_prefetch=0,
            grid=grid,
            in_specs=[
                pl.BlockSpec((tm, tk), lambda i, j, k: (i, k)),   # x       (M, K)
                pl.BlockSpec((tk, tn), lambda i, j, k: (k, j)),   # weight  (K, N)
                pl.BlockSpec((1, tn), lambda i, j, k: (0, j)),    # bias    (1, N)
            ],
            out_specs=pl.BlockSpec((tm, tn), lambda i, j, k: (i, j)),
            scratch_shapes=scratch_shapes,
        ),
        compiler_params=pltpu.CompilerParams(
            dimension_semantics=("parallel", "parallel", "arbitrary"),
            vmem_limit_bytes=_VMEM_LIMIT_BYTES),
        cost_estimate=cost,
    )(x2d, w_t, b2d)

    out = out_p[:M, :N] if (M_pad, N_pad) != (M, N) else out_p
    return out.reshape(orig_shape[:-1] + (out_features,))


if __name__ == "__main__":
    # Small shapes consistent with EqualizedLinear(in_features=32, out_features=64)
    batch = 8
    in_features = 32
    out_features = 64
    bias_init = 0.0

    key = jax.random.PRNGKey(0)
    k_x, k_w = jax.random.split(key)

    # Deterministic "parameters": \hat{w} ~ N(0, 1), bias = const.
    x = jax.random.normal(k_x, (batch, in_features), dtype=jnp.float32)
    weight = jax.random.normal(k_w, (out_features, in_features), dtype=jnp.float32)
    bias = jnp.ones((out_features,), dtype=jnp.float32) * bias_init

    # Reference in plain JAX (same math as F.linear(x, w*c, bias)).
    c = 1.0 / math.sqrt(in_features)
    y_ref = x @ (weight * c).T + bias

    # Full-precision path (default).
    y = equalized_linear(x, weight, bias)
    jax.block_until_ready(y)
    assert y.shape == (batch, out_features)
    assert jnp.allclose(y, y_ref, atol=1e-5, rtol=1e-5)

    # bf16 MXU operands with f32 accumulation (looser tolerance).
    y_bf16 = equalized_linear(x, weight, bias, matmul_dtype=jnp.bfloat16)
    jax.block_until_ready(y_bf16)
    assert y_bf16.shape == (batch, out_features)
    assert jnp.allclose(y_bf16, y_ref, atol=5e-2, rtol=5e-2)

    print("KERNEL_OK")
</pallas_src>

<mosaic_0001>
module attributes {stable_mosaic.version = 11 : i64} {
  func.func @_eq_linear_kernel_f32(%arg0: i32, %arg1: i32, %arg2: i32, %arg3: memref<8x32xf32, #tpu.memory_space<vmem>>, %arg4: memref<32x64xf32, #tpu.memory_space<vmem>>, %arg5: memref<1x64xf32, #tpu.memory_space<vmem>>, %arg6: memref<8x64xf32, #tpu.memory_space<vmem>>) attributes {dimension_semantics = [#tpu.dimension_semantics<parallel>, #tpu.dimension_semantics<parallel>, #tpu.dimension_semantics<arbitrary>], iteration_bounds = array<i64: 1, 1, 1>, scalar_prefetch = 0 : i64, scratch_operands = 0 : i64, tpu.core_type = #tpu.core_type<tc>, window_params = [{transform_indices = @transform_0, window_bounds = array<i64: 8, 32>}, {transform_indices = @transform_1, window_bounds = array<i64: 32, 64>}, {transform_indices = @transform_2, window_bounds = array<i64: 1, 64>}, {transform_indices = @transform_3, window_bounds = array<i64: 8, 64>}]} {
    %c0_i32 = arith.constant 0 : i32
    %0 = arith.cmpi eq, %arg2, %c0_i32 : i32
    %1 = arith.extui %0 : i1 to i32
    %c0_i32_0 = arith.constant 0 : i32
    %2 = arith.cmpi ne, %1, %c0_i32_0 : i32
    scf.if %2 {
      %cst_10 = arith.constant 0.000000e+00 : f32
      %12 = vector.broadcast %cst_10 : f32 to vector<8x64xf32>
      %c0_11 = arith.constant 0 : index
      %c0_12 = arith.constant 0 : index
      %13 = vector.load %arg6[%c0_11, %c0_12] : memref<8x64xf32, #tpu.memory_space<vmem>>, vector<8x64xf32>
      tpu.vector_store %arg6[%c0_11, %c0_12], %12 {strides = array<i32>} : memref<8x64xf32, #tpu.memory_space<vmem>>, vector<8x64xf32>,
    } else {
    }
    %c0 = arith.constant 0 : index
    %c0_1 = arith.constant 0 : index
    %3 = vector.load %arg6[%c0, %c0_1] : memref<8x64xf32, #tpu.memory_space<vmem>>, vector<8x64xf32>
    %c0_2 = arith.constant 0 : index
    %c0_3 = arith.constant 0 : index
    %4 = vector.load %arg3[%c0_2, %c0_3] : memref<8x32xf32, #tpu.memory_space<vmem>>, vector<8x32xf32>
    %c0_4 = arith.constant 0 : index
    %c0_5 = arith.constant 0 : index
    %5 = vector.load %arg4[%c0_4, %c0_5] : memref<32x64xf32, #tpu.memory_space<vmem>>, vector<32x64xf32>
    %cst = arith.constant dense<0.000000e+00> : vector<8x64xf32>
    %6 = tpu.matmul %4, %5, %cst {dimension_numbers = #tpu.dot_dimension_numbers<[1], [0], [0], [1], [0, 0, 1, 1], [], []>} : vector<8x32xf32>, vector<32x64xf32>, vector<8x64xf32> -> vector<8x64xf32>
    %7 = arith.addf %3, %6 : vector<8x64xf32>
    %c0_6 = arith.constant 0 : index
    %c0_7 = arith.constant 0 : index
    %8 = vector.load %arg6[%c0_6, %c0_7] : memref<8x64xf32, #tpu.memory_space<vmem>>, vector<8x64xf32>
    tpu.vector_store %arg6[%c0_6, %c0_7], %7 {strides = array<i32>} : memref<8x64xf32, #tpu.memory_space<vmem>>, vector<8x64xf32>,
    %c0_i32_8 = arith.constant 0 : i32
    %9 = arith.cmpi eq, %arg2, %c0_i32_8 : i32
    %10 = arith.extui %9 : i1 to i32
    %c0_i32_9 = arith.constant 0 : i32
    %11 = arith.cmpi ne, %10, %c0_i32_9 : i32
    scf.if %11 {
      %c0_10 = arith.constant 0 : index
      %c0_11 = arith.constant 0 : index
      %12 = vector.load %arg6[%c0_10, %c0_11] : memref<8x64xf32, #tpu.memory_space<vmem>>, vector<8x64xf32>
      %cst_12 = arith.constant 0.176776692 : f32
      %13 = vector.broadcast %cst_12 : f32 to vector<8x64xf32>
      %14 = arith.mulf %12, %13 : vector<8x64xf32>
      %c0_13 = arith.constant 0 : index
      %c0_14 = arith.constant 0 : index
      %15 = vector.load %arg5[%c0_13, %c0_14] : memref<1x64xf32, #tpu.memory_space<vmem>>, vector<1x64xf32>
      %16 = vector.broadcast %15 : vector<1x64xf32> to vector<8x64xf32>
      %17 = arith.addf %14, %16 : vector<8x64xf32>
      %c0_15 = arith.constant 0 : index
      %c0_16 = arith.constant 0 : index
      %18 = vector.load %arg6[%c0_15, %c0_16] : memref<8x64xf32, #tpu.memory_space<vmem>>, vector<8x64xf32>
      tpu.vector_store %arg6[%c0_15, %c0_16], %17 {strides = array<i32>} : memref<8x64xf32, #tpu.memory_space<vmem>>, vector<8x64xf32>,
    } else {
    }
    return
  }
  func.func @transform_0(%arg0: i32, %arg1: i32, %arg2: i32) -> (i32, i32) {
    %c0_i32 = arith.constant 0 : i32
    return %arg0, %arg2 : i32, i32
  }
  func.func @transform_1(%arg0: i32, %arg1: i32, %arg2: i32) -> (i32, i32) {
    %c0_i32 = arith.constant 0 : i32
    return %arg2, %arg1 : i32, i32
  }
  func.func @transform_2(%arg0: i32, %arg1: i32, %arg2: i32) -> (i32, i32) {
    %c0_i32 = arith.constant 0 : i32
    %c0_i32_0 = arith.constant 0 : i32
    return %c0_i32, %arg1 : i32, i32
  }
  func.func @transform_3(%arg0: i32, %arg1: i32, %arg2: i32) -> (i32, i32) {
    %c0_i32 = arith.constant 0 : i32
    return %arg0, %arg1 : i32, i32
  }
}

</mosaic_0001>

<llo_original>
// kernel: tpu_custom_call.1
$region0: #{tpu_custom_call.1}
  #allocation0 [shape = 'u32[]', space=smem, size = 0x4, offset = 0x4, fixed_abs, tag = 'smem constant byte address 0x4 - core index']
  #allocation1 [shape = 'u32[72,128]{1,0:T(1,128)}', space=vmem, size = 0x9000, scoped, tag = 'internal scratch']
  %s0 = inlined_call_operand.hbm [shape: f32[8,32], index: 0, kind: input, shape index: {}]
  %s1 = inlined_call_operand.hbm [shape: f32[32,64], index: 1, kind: input, shape index: {}]
  %s2 = inlined_call_operand.vmem [shape: f32[1,64], index: 2, kind: input, shape index: {}]
  %s3 = inlined_call_operand.hbm [shape: f32[8,64], index: 3, kind: output, shape index: {}]
  %s4 = sld [smem:[#allocation0]]
  $region38: #{tpu_custom_call.1} parent=0
    _
  %s6 = ssub.s32 1, %s4
  %s7 = scalar_select 0, %s6, %s4
  $region1: #{tpu_custom_call.1} parent=0
    #allocation2 [shape = 'u8[4096]{0}', space=vmem, size = 0x1000, scoped, tag = 'input window, operand 0, single buffered']
    #allocation3 [shape = 's32[1]{0}', space=sflag, size = 0x4, scoped, tag = 'scoped memory for tpu_custom_call.1']
    #allocation4 [shape = 's32[1]{0}', space=sflag, size = 0x4, scoped, tag = 'scoped memory for tpu_custom_call.1']
    #allocation5 [shape = 'u8[16384]{0}', space=vmem, size = 0x4000, scoped, tag = 'input window, operand 1, single buffered']
    #allocation6 [shape = 's32[1]{0}', space=sflag, size = 0x4, scoped, tag = 'scoped memory for tpu_custom_call.1']
    #allocation7 [shape = 'u8[4096]{0}', space=vmem, size = 0x1000, scoped, tag = 'output window, operand 0, single buffered']
    %8 = vsyncpa [#allocation3], 0
    %9 = vsyncpa [#allocation6], 0
    %10 = vsyncpa [#allocation4], 0
    // Predicated region
    $region2: #{tpu_custom_call.1} parent=1 // pred_check
      _
    $region3: #{tpu_custom_call.1} parent=1 // pred_check_branch
      %12 = sbr.rel (0) target = $region5
    $region4: #{tpu_custom_call.1} parent=1 // pred_region
      %14 = vsyncadd [#allocation3], 0
      %s16 = sshll.u32 %s0, 4
      %s17 = int_to_ptr.hbm [resolvable:$true] %s16
      %s18 = sshll.u32 [#allocation2], 4
      %s19 = int_to_ptr.vmem [resolvable:$true] %s18
      %21 = dma.hbm_to_vmem [thread:$0]  %s17, 128, %s19, [#allocation3]
    $region5: #{tpu_custom_call.1} parent=1 // pred_fallthru
      _
    // Predicated region
    $region6: #{tpu_custom_call.1} parent=1 // pred_check
      _
    $region7: #{tpu_custom_call.1} parent=1 // pred_check_branch
      %23 = sbr.rel (0) target = $region9
    $region8: #{tpu_custom_call.1} parent=1 // pred_region
      %25 = vsyncadd [#allocation6], 0
      %s26 = sshll.u32 %s1, 4
      %s27 = int_to_ptr.hbm [resolvable:$true] %s26
      %s28 = sshll.u32 [#allocation5], 4
      %s29 = int_to_ptr.vmem [resolvable:$true] %s28
      %34 = dma.hbm_to_vmem [thread:$0]  %s27, 512, %s29, [#allocation6], 128, 128, 8
    $region9: #{tpu_custom_call.1} parent=1 // pred_fallthru
      _
    // Predicated region
    $region10: #{tpu_custom_call.1} parent=1 // pred_check
      _
    $region11: #{tpu_custom_call.1} parent=1 // pred_check_branch
      %36 = sbr.rel (0) target = $region13
    $region12: #{tpu_custom_call.1} parent=1 // pred_region
      _
    $region13: #{tpu_custom_call.1} parent=1 // pred_fallthru
      _
    // Predicated region
    $region14: #{tpu_custom_call.1} parent=1 // pred_check
      _
    $region15: #{tpu_custom_call.1} parent=1 // pred_check_branch
      %38 = sbr.rel (0) target = $region17
    $region16: #{tpu_custom_call.1} parent=1 // pred_region
      %40 = dma.done [#allocation3], 128
    $region17: #{tpu_custom_call.1} parent=1 // pred_fallthru
      _
    // Predicated region
    $region18: #{tpu_custom_call.1} parent=1 // pred_check
      _
    $region19: #{tpu_custom_call.1} parent=1 // pred_check_branch
      %42 = sbr.rel (0) target = $region21
    $region20: #{tpu_custom_call.1} parent=1 // pred_region
      %44 = dma.done [#allocation6], 512
    $region21: #{tpu_custom_call.1} parent=1 // pred_fallthru
      _
    %p45 = scmp.eq.s32.totalorder 0, 0
    // Predicated region
    $region22: #{tpu_custom_call.1} parent=1 // pred_check
      %p46 = pneg %p45
    $region23: #{tpu_custom_call.1} parent=1 // pred_check_branch
      %48 = sbr.rel (%p46) target = $region25
    $region24: #{tpu_custom_call.1} parent=1 // pred_region
      %vm49 = vcmask 523264
      %50 = vst.msk [vmem:[#allocation7] sm:$0xff] %vm49, 0.0
    $region25: #{tpu_custom_call.1} parent=1 // pred_fallthru
      _
    %v51 = vld [vmem:[#allocation7] sm:$0xff]
    %v52 = vld [vmem:[#allocation2] sm:$0xff]
    %v53 = vld [vmem:[#allocation5] sm:$0xff]
    %v54 = vld [vmem:[#allocation5 + $0x8] sm:$0xff]
    %v55 = vld [vmem:[#allocation5 + $0x10] sm:$0xff]
    %v56 = vld [vmem:[#allocation5 + $0x18] sm:$0xff]
    %vm57 = vcmask 261120
    %v59 = vsel %vm57, %v52, 0
    %61 = vmatpush.msra.mxu0 0.0
    %62 = vmatpush.msra.mxu0 0.0
    %63 = vmatpush.msra.mxu0 0.0
    %64 = vmatpush.msra.mxu0 0.0
    %65 = vmatpush.msra.mxu0 0.0
    %66 = vmatpush.msra.mxu0 0.0
    %67 = vmatpush.msra.mxu0 0.0
    %68 = vmatpush.msra.mxu0 0.0
    %69 = vmatpush.msra.mxu0 0.0
    %70 = vmatpush.msra.mxu0 0.0
    %71 = vmatpush.msra.mxu0 0.0
    %72 = vmatpush.msra.mxu0 0.0
    %73 = vmatpush.msra.mxu0 %v56
    %74 = vmatpush.msra.mxu0 %v55
    %75 = vmatpush.msra.mxu0 %v54
    %76 = vmatpush.msra.mxu0 %v53
    %77 = vmatmul.f32.gmra.mxu0 %v59
    %v78 = vpop.f32.mrf.mxu0
    %v79 = vadd.f32 0.0, %v78
    %80 = vdwg.mxu0
    %v81 = vadd.f32 %v51, %v79
    %vm82 = vcmask 523264
    %83 = vst.msk [vmem:[#allocation7] sm:$0xff] %vm82, %v81
    // Predicated region
    $region26: #{tpu_custom_call.1} parent=1 // pred_check
      %p84 = pneg %p45
    $region27: #{tpu_custom_call.1} parent=1 // pred_check_branch
      %86 = sbr.rel (%p84) target = $region29
    $region28: #{tpu_custom_call.1} parent=1 // pred_region
      %v87 = vld [vmem:[#allocation7] sm:$0xff]
      %v88 = vmul.f32 %v87, 0.17677669
      %v89 = vld [vmem:[%s2] sm:$0x1]
      %v91 = vperm.slane %v89, 0
      %v93 = vadd.f32 %v88, %v91
      %94 = vst.msk [vmem:[#allocation7] sm:$0xff] %vm82, %v93
    $region29: #{tpu_custom_call.1} parent=1 // pred_fallthru
      _
    // Predicated region
    $region30: #{tpu_custom_call.1} parent=1 // pred_check
      _
    $region31: #{tpu_custom_call.1} parent=1 // pred_check_branch
      %96 = sbr.rel (0) target = $region33
    $region32: #{tpu_custom_call.1} parent=1 // pred_region
      %98 = vsyncadd [#allocation4], 0
      %s100 = sshll.u32 [#allocation7], 4
      %s101 = int_to_ptr.vmem [resolvable:$true] %s100
      %s102 = sshll.u32 %s3, 4
      %s103 = int_to_ptr.hbm [resolvable:$true] %s102
      %105 = dma.vmem_to_hbm [thread:$0]  %s101, 128, %s103, [#allocation4]
    $region33: #{tpu_custom_call.1} parent=1 // pred_fallthru
      _
    // Predicated region
    $region34: #{tpu_custom_call.1} parent=1 // pred_check
      _
    $region35: #{tpu_custom_call.1} parent=1 // pred_check_branch
      %107 = sbr.rel (0) target = $region37
    $region36: #{tpu_custom_call.1} parent=1 // pred_region
      %109 = dma.done [#allocation4], 128
    $region37: #{tpu_custom_call.1} parent=1 // pred_fallthru
      _
    %110 = vsyncpa [#allocation3], 1
    %111 = vsyncpa [#allocation6], 1
    %112 = vsyncpa [#allocation4], 1

</llo_original>
